<compile_context>
chip_gen: v7x
topology: tpu7x:2x2x1
jax: 0.10.0
libtpu: 0.0.40
codegen_flags: <defaults>
</compile_context>

<pallas_src>
import jax
import jax.numpy as jnp
from jax.experimental import pallas as pl
from jax.experimental.pallas import tpu as pltpu


def ffm_kernel(xsp_ref, xcp_ref, wsp_ref, wcp_ref, scale_ref, o_ref):
    # xsp_ref:   (C1, T_HW)   spatial tile of fsp (NCHW-native, HW on lanes)
    # xcp_ref:   (C2, T_HW)   spatial tile of fcp
    # wsp_ref:   (Cout, C1)   convblk weight columns for the fsp channels
    # wcp_ref:   (Cout, C2)   convblk weight columns for the fcp channels
    # scale_ref: (Cout, 1)    per-batch (1 + sigmoid(attention)) vector (f32)
    # o_ref:     (Cout, T_HW)
    feat = jnp.dot(wsp_ref[...], xsp_ref[...],
                   preferred_element_type=jnp.float32)
    feat = feat + jnp.dot(wcp_ref[...], xcp_ref[...],
                          preferred_element_type=jnp.float32)
    # f32 epilogue (safe on v5e's f32-only VPU), cast on store.
    o_ref[...] = (feat * scale_ref[...]).astype(o_ref.dtype)


def _vmem_capacity_bytes():
    try:
        return int(pltpu.get_tpu_info().vmem_capacity_bytes)
    except Exception:
        return 64 << 20   # conservative default (v7x per-core VMEM)


def _pick_tile_hw(HW, N, C1, C2, Cout, in_bytes, out_bytes, budget_bytes):
    """Largest HW tile (multiple of 128 lanes, <= 4096) whose working set fits
    the VMEM budget.  Accounts for double-buffered in/out tiles, the f32
    matmul intermediates, and the (double-buffered) weights + scale."""
    per_lane = (2 * (C1 + C2) * in_bytes   # x_sp / x_cp tiles (x2 buffers)
                + 2 * Cout * out_bytes     # output tile (x2 buffers)
                + 2 * Cout * 4)            # f32 dot results / accumulator
    fixed = 2 * ((C1 + C2) * Cout + Cout) * 4   # weights + scale (x2 buffers)
    avail = max(budget_bytes - fixed, per_lane * 128)
    t = min(avail // max(per_lane, 1), 4096, HW)
    if t < HW:
        t = max(128, (t // 128) * 128)
    # v7x has 2 TensorCores: make sure a single-image call still yields a
    # >=2-element grid so both cores get work and the pipeline has depth.
    if N * ((HW + t - 1) // t) < 2 and HW >= 256:
        t = max(128, ((HW // 2) // 128) * 128)
    return int(t)


def feature_fusion_module(fsp, fcp, w_convblk, w_conv1, w_conv2):
    """
    fsp, fcp:  NCHW arrays (f32 or bf16), same N/H/W.
    w_convblk: (out_chan, in_chan, 1, 1)
    w_conv1:   (out_chan//4, out_chan, 1, 1)
    w_conv2:   (out_chan, out_chan//4, 1, 1)
    Returns:   NCHW (N, out_chan, H, W), same dtype as fsp.
    """
    N, C1, H, W = fsp.shape
    C2 = fcp.shape[1]
    Cin = C1 + C2
    Cout = w_convblk.shape[0]
    HW = H * W
    in_dt = fsp.dtype
    out_dt = in_dt
    in_bytes = jnp.dtype(in_dt).itemsize
    out_bytes = jnp.dtype(out_dt).itemsize

    # 1x1 conv weights as matmul operands; convblk weight is split along the
    # concat axis so the concatenated tensor never hits HBM.
    w0 = w_convblk[:, :, 0, 0].astype(jnp.float32)        # (Cout, Cin)
    w_sp = w0[:, :C1]                                      # (Cout, C1)
    w_cp = w0[:, C1:]                                      # (Cout, C2)
    w1 = w_conv1[:, :, 0, 0].astype(jnp.float32)           # (Cmid, Cout)
    w2 = w_conv2[:, :, 0, 0].astype(jnp.float32)           # (Cout, Cmid)

    # --- attention hoist (exact via linearity: mean_hw(W @ x) == W @ mean_hw(x),
    # valid ONLY because convblk has no bias/BN/activation before the pool) ---
    mean_sp = jnp.mean(fsp.astype(jnp.float32), axis=(2, 3))   # (N, C1)
    mean_cp = jnp.mean(fcp.astype(jnp.float32), axis=(2, 3))   # (N, C2)
    pooled = mean_sp @ w_sp.T + mean_cp @ w_cp.T               # (N, Cout)
    a = jnp.maximum(pooled @ w1.T, 0.0)                        # (N, Cmid)
    atten = jax.nn.sigmoid(a @ w2.T)                           # (N, Cout)
    scale = (1.0 + atten).reshape(N, Cout, 1).astype(jnp.float32)

    # NCHW-native: flatten only the spatial dims (free for contiguous NCHW).
    # HW rides the lane axis, so no layout transposes are needed anywhere.
    x_sp = fsp.reshape(N, C1, HW)
    x_cp = fcp.reshape(N, C2, HW)

    # Kernel matmul operands follow the activation dtype (bf16-friendly on
    # v6e/v7x); accumulation stays f32 via preferred_element_type.
    w_sp_k = w_sp.astype(in_dt)
    w_cp_k = w_cp.astype(in_dt)

    vmem_cap = _vmem_capacity_bytes()
    budget = int(vmem_cap * 0.55)   # ~35 MiB on v7x (64 MiB), ~70 MiB on v5e/v6e (128 MiB)
    t_hw = _pick_tile_hw(HW, N, C1, C2, Cout, in_bytes, out_bytes, budget)
    num_t = (HW + t_hw - 1) // t_hw
    grid = (N, num_t)

    # Actual VMEM footprint of the chosen tiling (+ headroom), capped below
    # physical capacity.  (Weights/scale counted double-buffered; a
    # pipeline_mode=pl.Buffered(1) downgrade would shave ~0.5-1 MiB more.)
    usage = (t_hw * (2 * (C1 + C2) * in_bytes + 2 * Cout * out_bytes + 2 * Cout * 4)
             + 2 * ((C1 + C2) * Cout + Cout) * 4)
    vmem_limit = int(min(max(usage + (4 << 20), 16 << 20), int(vmem_cap * 0.85)))

    flops = 2 * N * HW * Cin * Cout + N * HW * Cout
    bytes_accessed = (N * HW * (Cin * in_bytes + Cout * out_bytes)
                      + Cin * Cout * in_bytes + N * Cout * 4)

    out = pl.pallas_call(
        ffm_kernel,
        out_shape=jax.ShapeDtypeStruct((N, Cout, HW), out_dt),
        grid=grid,
        in_specs=[
            pl.BlockSpec((None, C1, t_hw), lambda n, t: (n, 0, t)),
            pl.BlockSpec((None, C2, t_hw), lambda n, t: (n, 0, t)),
            pl.BlockSpec((Cout, C1), lambda n, t: (0, 0)),
            pl.BlockSpec((Cout, C2), lambda n, t: (0, 0)),
            pl.BlockSpec((None, Cout, 1), lambda n, t: (n, 0, 0)),
        ],
        out_specs=pl.BlockSpec((None, Cout, t_hw), lambda n, t: (n, 0, t)),
        compiler_params=pltpu.CompilerParams(
            dimension_semantics=("parallel", "parallel"),
            vmem_limit_bytes=vmem_limit,
        ),
        cost_estimate=pl.CostEstimate(
            flops=flops, transcendentals=0, bytes_accessed=bytes_accessed),
    )(x_sp, x_cp, w_sp_k, w_cp_k, scale)

    # Free reshape back to NCHW (no transpose).
    return out.reshape(N, Cout, H, W)


def _kaiming_normal(key, out_c, in_c, a=1.0):
    # kaiming_normal_(a=1): gain = sqrt(2/(1+a^2)) = 1, fan_in = in_c * 1 * 1
    std = (2.0 / (1.0 + a * a)) ** 0.5 / (in_c ** 0.5)
    return jax.random.normal(key, (out_c, in_c, 1, 1), jnp.float32) * std


def _reference(fsp, fcp, w0, w1, w2):
    # pure-JAX reference of the PyTorch forward (norm_layer=None)
    fcat = jnp.concatenate([fsp, fcp], axis=1)
    feat = jnp.einsum('nchw,oc->nohw', fcat, w0[:, :, 0, 0])
    pooled = jnp.mean(feat, axis=(2, 3), keepdims=True)
    a = jnp.einsum('nchw,oc->nohw', pooled, w1[:, :, 0, 0])
    a = jnp.maximum(a, 0.0)
    a = jnp.einsum('nchw,oc->nohw', a, w2[:, :, 0, 0])
    atten = jax.nn.sigmoid(a)
    return feat * atten + feat


if __name__ == "__main__":
    key = jax.random.PRNGKey(0)
    k1, k2, k3, k4, k5 = jax.random.split(key, 5)

    N, H, W = 2, 16, 16
    C_sp, C_cp = 4, 4           # fsp / fcp channel counts
    in_chan = C_sp + C_cp       # 8
    out_chan = 16               # out_chan // 4 = 4

    fsp = jax.random.normal(k1, (N, C_sp, H, W), jnp.float32)
    fcp = jax.random.normal(k2, (N, C_cp, H, W), jnp.float32)

    w_convblk = _kaiming_normal(k3, out_chan, in_chan)
    w_conv1 = _kaiming_normal(k4, out_chan // 4, out_chan)
    w_conv2 = _kaiming_normal(k5, out_chan, out_chan // 4)

    out = feature_fusion_module(fsp, fcp, w_convblk, w_conv1, w_conv2)
    out = jax.block_until_ready(out)

    ref = _reference(fsp, fcp, w_convblk, w_conv1, w_conv2)
    assert out.shape == (N, out_chan, H, W)
    assert jnp.allclose(out, ref, atol=1e-4, rtol=1e-4), "mismatch vs reference"

    print("KERNEL_OK")
</pallas_src>

<mosaic_0001>
module attributes {stable_mosaic.version = 11 : i64} {
  func.func @ffm_kernel(%arg0: i32, %arg1: i32, %arg2: memref<1x4x256xf32, #tpu.memory_space<vmem>>, %arg3: memref<1x4x256xf32, #tpu.memory_space<vmem>>, %arg4: memref<16x4xf32, #tpu.memory_space<vmem>>, %arg5: memref<16x4xf32, #tpu.memory_space<vmem>>, %arg6: memref<1x16x1xf32, #tpu.memory_space<vmem>>, %arg7: memref<1x16x256xf32, #tpu.memory_space<vmem>>) attributes {dimension_semantics = [#tpu.dimension_semantics<parallel>, #tpu.dimension_semantics<parallel>], iteration_bounds = array<i64: 2, 1>, scalar_prefetch = 0 : i64, scratch_operands = 0 : i64, tpu.core_type = #tpu.core_type<tc>, window_params = [{transform_indices = @transform_0, window_bounds = array<i64: 1, 4, 256>}, {transform_indices = @transform_1, window_bounds = array<i64: 1, 4, 256>}, {pipeline_mode = #tpu.pipeline_mode<synchronous>, transform_indices = @transform_2, window_bounds = array<i64: 16, 4>}, {pipeline_mode = #tpu.pipeline_mode<synchronous>, transform_indices = @transform_3, window_bounds = array<i64: 16, 4>}, {transform_indices = @transform_4, window_bounds = array<i64: 1, 16, 1>}, {transform_indices = @transform_5, window_bounds = array<i64: 1, 16, 256>}]} {
    %c0 = arith.constant 0 : index
    %c0_0 = arith.constant 0 : index
    %0 = vector.load %arg4[%c0, %c0_0] : memref<16x4xf32, #tpu.memory_space<vmem>>, vector<16x4xf32>
    %c0_1 = arith.constant 0 : index
    %c0_2 = arith.constant 0 : index
    %c0_3 = arith.constant 0 : index
    %1 = vector.load %arg2[%c0_1, %c0_2, %c0_3] : memref<1x4x256xf32, #tpu.memory_space<vmem>>, vector<1x4x256xf32>
    %2 = vector.shape_cast %1 : vector<1x4x256xf32> to vector<4x256xf32>
    %cst = arith.constant dense<0.000000e+00> : vector<16x256xf32>
    %3 = tpu.matmul %0, %2, %cst {dimension_numbers = #tpu.dot_dimension_numbers<[1], [0], [0], [1], [0, 0, 1, 1], [], []>} : vector<16x4xf32>, vector<4x256xf32>, vector<16x256xf32> -> vector<16x256xf32>
    %c0_4 = arith.constant 0 : index
    %c0_5 = arith.constant 0 : index
    %4 = vector.load %arg5[%c0_4, %c0_5] : memref<16x4xf32, #tpu.memory_space<vmem>>, vector<16x4xf32>
    %c0_6 = arith.constant 0 : index
    %c0_7 = arith.constant 0 : index
    %c0_8 = arith.constant 0 : index
    %5 = vector.load %arg3[%c0_6, %c0_7, %c0_8] : memref<1x4x256xf32, #tpu.memory_space<vmem>>, vector<1x4x256xf32>
    %6 = vector.shape_cast %5 : vector<1x4x256xf32> to vector<4x256xf32>
    %cst_9 = arith.constant dense<0.000000e+00> : vector<16x256xf32>
    %7 = tpu.matmul %4, %6, %cst_9 {dimension_numbers = #tpu.dot_dimension_numbers<[1], [0], [0], [1], [0, 0, 1, 1], [], []>} : vector<16x4xf32>, vector<4x256xf32>, vector<16x256xf32> -> vector<16x256xf32>
    %8 = arith.addf %3, %7 : vector<16x256xf32>
    %c0_10 = arith.constant 0 : index
    %c0_11 = arith.constant 0 : index
    %c0_12 = arith.constant 0 : index
    %9 = vector.load %arg6[%c0_10, %c0_11, %c0_12] : memref<1x16x1xf32, #tpu.memory_space<vmem>>, vector<1x16x1xf32>
    %10 = vector.shape_cast %9 : vector<1x16x1xf32> to vector<16x1xf32>
    %11 = vector.broadcast %10 : vector<16x1xf32> to vector<16x256xf32>
    %12 = arith.mulf %8, %11 : vector<16x256xf32>
    %c0_13 = arith.constant 0 : index
    %c0_14 = arith.constant 0 : index
    %c0_15 = arith.constant 0 : index
    %13 = vector.load %arg7[%c0_13, %c0_14, %c0_15] : memref<1x16x256xf32, #tpu.memory_space<vmem>>, vector<1x16x256xf32>
    %14 = vector.shape_cast %13 : vector<1x16x256xf32> to vector<16x256xf32>
    %15 = vector.shape_cast %12 : vector<16x256xf32> to vector<1x16x256xf32>
    tpu.vector_store %arg7[%c0_13, %c0_14, %c0_15], %15 {strides = array<i32>} : memref<1x16x256xf32, #tpu.memory_space<vmem>>, vector<1x16x256xf32>,
    return
  }
  func.func @transform_0(%arg0: i32, %arg1: i32) -> (i32, i32, i32) {
    %c0_i32 = arith.constant 0 : i32
    %c0_i32_0 = arith.constant 0 : i32
    return %arg0, %c0_i32, %arg1 : i32, i32, i32
  }
  func.func @transform_1(%arg0: i32, %arg1: i32) -> (i32, i32, i32) {
    %c0_i32 = arith.constant 0 : i32
    %c0_i32_0 = arith.constant 0 : i32
    return %arg0, %c0_i32, %arg1 : i32, i32, i32
  }
  func.func @transform_2(%arg0: i32, %arg1: i32) -> (i32, i32) {
    %c0_i32 = arith.constant 0 : i32
    %c0_i32_0 = arith.constant 0 : i32
    %c0_i32_1 = arith.constant 0 : i32
    return %c0_i32, %c0_i32_0 : i32, i32
  }
  func.func @transform_3(%arg0: i32, %arg1: i32) -> (i32, i32) {
    %c0_i32 = arith.constant 0 : i32
    %c0_i32_0 = arith.constant 0 : i32
    %c0_i32_1 = arith.constant 0 : i32
    return %c0_i32, %c0_i32_0 : i32, i32
  }
  func.func @transform_4(%arg0: i32, %arg1: i32) -> (i32, i32, i32) {
    %c0_i32 = arith.constant 0 : i32
    %c0_i32_0 = arith.constant 0 : i32
    %c0_i32_1 = arith.constant 0 : i32
    return %arg0, %c0_i32, %c0_i32_0 : i32, i32, i32
  }
  func.func @transform_5(%arg0: i32, %arg1: i32) -> (i32, i32, i32) {
    %c0_i32 = arith.constant 0 : i32
    %c0_i32_0 = arith.constant 0 : i32
    return %arg0, %c0_i32, %arg1 : i32, i32, i32
  }
}

</mosaic_0001>

<llo_original>
// kernel: tpu_custom_call.1
$region0: #{tpu_custom_call.1}
  #allocation0 [shape = 'u32[]', space=smem, size = 0x4, offset = 0x4, fixed_abs, tag = 'smem constant byte address 0x4 - core index']
  #allocation1 [shape = 'u32[144,128]{1,0:T(1,128)}', space=vmem, size = 0x12000, scoped, tag = 'internal scratch']
  %s0 = inlined_call_operand.vmem [shape: f32[2,4,256], index: 0, kind: input, shape index: {}]
  %s1 = inlined_call_operand.vmem [shape: f32[2,4,256], index: 1, kind: input, shape index: {}]
  %s2 = inlined_call_operand.vmem [shape: f32[16,4], index: 2, kind: input, shape index: {}]
  %s3 = inlined_call_operand.vmem [shape: f32[16,4], index: 3, kind: input, shape index: {}]
  %s4 = inlined_call_operand.vmem [shape: f32[2,16,1], index: 4, kind: input, shape index: {}]
  %s5 = inlined_call_operand.hbm [shape: f32[2,16,256], index: 5, kind: output, shape index: {}]
  %s6 = sld [smem:[#allocation0]]
  $region53: #{tpu_custom_call.1} parent=0
    _
  %s8 = ssub.s32 1, %s6
  %s9 = scalar_select 0, %s8, %s6
  $region1: #{tpu_custom_call.1} parent=0
    #allocation2 [shape = 'u8[32768]{0}', space=vmem, size = 0x8000, scoped, tag = 'output window, operand 0']
    #allocation3 [shape = 's32[2]{0}', space=sflag, size = 0x8, scoped, tag = 'scoped memory for tpu_custom_call.1']
    %10 = vsyncpa [#allocation3], 0
    %s11 = scalar_lea.sflag [#allocation3], 1
    %12 = vsyncpa %s11, 0
    loop: start=0, step=1, limit=4
    $region2: #{tpu_custom_call.1} parent=1 // loop_pre_header
      _
    $region3: #{tpu_custom_call.1} parent=1 // loop_header
      %s14 = sphi 0, %s18
      %p15 = scmp.ge.s32.totalorder %s14, 4
      %s21 = sphi 0, %s33
      %s22 = sphi 0, %s29
      %s23 = sphi 0, %s21
      %s24 = sphi 0, %s22
      %s25 = sphi 0, %s23
      %s26 = sphi 0, %s24
      %s38 = sphi 0, %s40
      %s41 = sphi 0, %s38
      %s42 = sphi 0, %s41
      %s58 = sphi 0, %s42
      %s66 = sphi 0, %s68
      %s69 = sphi 0, %s66
      %s70 = sphi 0, %s69
      %s86 = sphi 0, %s70
      %s90 = sphi 0, %s90
      %s92 = sphi 0, %s90
      %s93 = sphi 0, %s92
      %s107 = sphi 0, %s93
      %s111 = sphi 0, %s111
      %s113 = sphi 0, %s111
      %s114 = sphi 0, %s113
      %s128 = sphi 0, %s114
      %s134 = sphi 0, %s136
      %s137 = sphi 0, %s134
      %s138 = sphi 0, %s137
      %s154 = sphi 0, %s138
      %s162 = sphi 0, %s164
      %s165 = sphi 0, %s162
      %s166 = sphi 0, %s165
      %s182 = sphi 0, %s166
    $region4: #{tpu_custom_call.1} parent=1 // loop_header_branch
      %17 = sbr.rel (%p15) target = $region8
    $region5: #{tpu_custom_call.1} parent=1 // loop_body
      %s19 = ssub.s32 %s14, 1
      %s20 = ssub.s32 %s14, 2
      %s27 = sadd.s32 1, %s22
      %p28 = scmp.ge.s32.totalorder %s27, 1
      %s29 = scalar_select %p28, 0, %s27
      %s30 = sadd.s32 1, %s21
      %s31 = scalar_select %p28, %s30, %s21
      %p32 = scmp.ge.s32.totalorder %s31, 2
      %s33 = scalar_select %p32, 0, %s31
      %s34 = ssub.s32 %s21, %s33
      %s35 = ssub.s32 %s22, %s29
      %s36 = sor.u32 %s34, %s35
      %p37 = scmp.eq.s32.totalorder %s36, 0
      %s39 = sadd.s32 %s38, 1
      %s40 = scalar_select %p37, %s38, %s39
      %p43 = pneg %p37
      %p44 = scmp.eq.s32.totalorder %s14, 1
      %p45 = por %p43, %p44
      %p46 = scmp.ne.s32.totalorder %s38, %s41
      %p47 = scmp.eq.s32.totalorder %s14, 0
      %p48 = por %p46, %p47
      %p49 = scmp.ne.s32.totalorder %s38, %s41
      %p50 = scmp.eq.s32.totalorder %s19, 1
      %p51 = por %p49, %p50
      %p52 = scmp.ne.s32.totalorder %s41, %s42
      %p53 = scmp.eq.s32.totalorder %s19, 0
      %p54 = por %p52, %p53
      %p55 = scmp.ne.s32.totalorder %s41, %s42
      %p56 = scmp.eq.s32.totalorder %s20, 1
      %p57 = por %p55, %p56
      %p59 = scmp.ne.s32.totalorder %s42, %s58
      %p60 = scmp.eq.s32.totalorder %s20, 0
      %p61 = por %p59, %p60
      %s62 = ssub.s32 %s21, %s33
      %s63 = ssub.s32 %s22, %s29
      %s64 = sor.u32 %s62, %s63
      %p65 = scmp.eq.s32.totalorder %s64, 0
      %s67 = sadd.s32 %s66, 1
      %s68 = scalar_select %p65, %s66, %s67
      %p71 = pneg %p65
      %p72 = scmp.eq.s32.totalorder %s14, 1
      %p73 = por %p71, %p72
      %p74 = scmp.ne.s32.totalorder %s66, %s69
      %p75 = scmp.eq.s32.totalorder %s14, 0
      %p76 = por %p74, %p75
      %p77 = scmp.ne.s32.totalorder %s66, %s69
      %p78 = scmp.eq.s32.totalorder %s19, 1
      %p79 = por %p77, %p78
      %p80 = scmp.ne.s32.totalorder %s69, %s70
      %p81 = scmp.eq.s32.totalorder %s19, 0
      %p82 = por %p80, %p81
      %p83 = scmp.ne.s32.totalorder %s69, %s70
      %p84 = scmp.eq.s32.totalorder %s20, 1
      %p85 = por %p83, %p84
      %p87 = scmp.ne.s32.totalorder %s70, %s86
      %p88 = scmp.eq.s32.totalorder %s20, 0
      %p89 = por %p87, %p88
      %s91 = sadd.s32 %s90, 1
      %p94 = scmp.eq.s32.totalorder %s14, 1
      %p95 = scmp.ne.s32.totalorder %s90, %s92
      %p96 = scmp.eq.s32.totalorder %s14, 0
      %p97 = por %p95, %p96
      %p98 = scmp.ne.s32.totalorder %s90, %s92
      %p99 = scmp.eq.s32.totalorder %s19, 1
      %p100 = por %p98, %p99
      %p101 = scmp.ne.s32.totalorder %s92, %s93
      %p102 = scmp.eq.s32.totalorder %s19, 0
      %p103 = por %p101, %p102
      %p104 = scmp.ne.s32.totalorder %s92, %s93
      %p105 = scmp.eq.s32.totalorder %s20, 1
      %p106 = por %p104, %p105
      %p108 = scmp.ne.s32.totalorder %s93, %s107
      %p109 = scmp.eq.s32.totalorder %s20, 0
      %p110 = por %p108, %p109
      %s112 = sadd.s32 %s111, 1
      %p115 = scmp.eq.s32.totalorder %s14, 1
      %p116 = scmp.ne.s32.totalorder %s111, %s113
      %p117 = scmp.eq.s32.totalorder %s14, 0
      %p118 = por %p116, %p117
      %p119 = scmp.ne.s32.totalorder %s111, %s113
      %p120 = scmp.eq.s32.totalorder %s19, 1
      %p121 = por %p119, %p120
      %p122 = scmp.ne.s32.totalorder %s113, %s114
      %p123 = scmp.eq.s32.totalorder %s19, 0
      %p124 = por %p122, %p123
      %p125 = scmp.ne.s32.totalorder %s113, %s114
      %p126 = scmp.eq.s32.totalorder %s20, 1
      %p127 = por %p125, %p126
      %p129 = scmp.ne.s32.totalorder %s114, %s128
      %p130 = scmp.eq.s32.totalorder %s20, 0
      %p131 = por %p129, %p130
      %s132 = ssub.s32 %s21, %s33
      %p133 = scmp.eq.s32.totalorder %s132, 0
      %s135 = sadd.s32 %s134, 1
      %s136 = scalar_select %p133, %s134, %s135
      %p139 = pneg %p133
      %p140 = scmp.eq.s32.totalorder %s14, 1
      %p141 = por %p139, %p140
      %p142 = scmp.ne.s32.totalorder %s134, %s137
      %p143 = scmp.eq.s32.totalorder %s14, 0
      %p144 = por %p142, %p143
      %p145 = scmp.ne.s32.totalorder %s134, %s137
      %p146 = scmp.eq.s32.totalorder %s19, 1
      %p147 = por %p145, %p146
      %p148 = scmp.ne.s32.totalorder %s137, %s138
      %p149 = scmp.eq.s32.totalorder %s19, 0
      %p150 = por %p148, %p149
      %p151 = scmp.ne.s32.totalorder %s137, %s138
      %p152 = scmp.eq.s32.totalorder %s20, 1
      %p153 = por %p151, %p152
      %p155 = scmp.ne.s32.totalorder %s138, %s154
      %p156 = scmp.eq.s32.totalorder %s20, 0
      %p157 = por %p155, %p156
      %s158 = ssub.s32 %s21, %s33
      %s159 = ssub.s32 %s22, %s29
      %s160 = sor.u32 %s158, %s159
      %p161 = scmp.eq.s32.totalorder %s160, 0
      %s163 = sadd.s32 %s162, 1
      %s164 = scalar_select %p161, %s162, %s163
      %p167 = pneg %p161
      %p168 = scmp.eq.s32.totalorder %s14, 1
      %p169 = por %p167, %p168
      %p170 = scmp.ne.s32.totalorder %s162, %s165
      %p171 = scmp.eq.s32.totalorder %s14, 0
      %p172 = por %p170, %p171
      %p173 = scmp.ne.s32.totalorder %s162, %s165
      %p174 = scmp.eq.s32.totalorder %s19, 1
      %p175 = por %p173, %p174
      %p176 = scmp.ne.s32.totalorder %s165, %s166
      %p177 = scmp.eq.s32.totalorder %s19, 0
      %p178 = por %p176, %p177
      %p179 = scmp.ne.s32.totalorder %s165, %s166
      %p180 = scmp.eq.s32.totalorder %s20, 1
      %p181 = por %p179, %p180
      %p183 = scmp.ne.s32.totalorder %s166, %s182
      %p184 = scmp.eq.s32.totalorder %s20, 0
      %p185 = por %p183, %p184
      %p186 = scmp.le.s32.totalorder 1, %s14
      %p187 = scmp.lt.s32.totalorder %s14, 3
      %p188 = pnand %p186, %p187
      %p189 = pneg %p188
      // Predicated region
      $region9: #{tpu_custom_call.1} parent=5 // pred_check
        _
      $region10: #{tpu_custom_call.1} parent=5 // pred_check_branch
        %191 = sbr.rel (%p188) target = $region12
      $region11: #{tpu_custom_call.1} parent=5 // pred_region
        %s192 = ssub.s32 %s14, 1
        // Predicated region
        $region13: #{tpu_custom_call.1} parent=11 // pred_check
          %p193 = pneg %p103
        $region14: #{tpu_custom_call.1} parent=11 // pred_check_branch
          %195 = sbr.rel (%p193) target = $region16
        $region15: #{tpu_custom_call.1} parent=11 // pred_region
          _
        $region16: #{tpu_custom_call.1} parent=11 // pred_fallthru
          _
        // Predicated region
        $region17: #{tpu_custom_call.1} parent=11 // pred_check
          %p196 = pneg %p124
        $region18: #{tpu_custom_call.1} parent=11 // pred_check_branch
          %198 = sbr.rel (%p196) target = $region20
        $region19: #{tpu_custom_call.1} parent=11 // pred_region
          _
        $region20: #{tpu_custom_call.1} parent=11 // pred_fallthru
          _
      $region12: #{tpu_custom_call.1} parent=5 // pred_fallthru
        _
      %p199 = scmp.lt.s32.totalorder %s14, 2
      // Predicated region
      $region21: #{tpu_custom_call.1} parent=5 // pred_check
        %p200 = pneg %p199
      $region22: #{tpu_custom_call.1} parent=5 // pred_check_branch
        %202 = sbr.rel (%p200) target = $region24
      $region23: #{tpu_custom_call.1} parent=5 // pred_region
        // Predicated region
        $region25: #{tpu_custom_call.1} parent=23 // pred_check
          %p203 = pneg %p48
        $region26: #{tpu_custom_call.1} parent=23 // pred_check_branch
          %205 = sbr.rel (%p203) target = $region28
        $region27: #{tpu_custom_call.1} parent=23 // pred_region
          %s206 = smul.u32 2, %s22
          %p207 = scmp.lt.s32.totalorder %s21, 1
          %s208 = scalar_select %p207, %s21, 1
          %p209 = scmp.lt.s32.totalorder %s206, 1
          %s210 = scalar_select %p209, %s206, 1
          %s211 = smul.addr %s208, 2
          %s212 = sadd.s32 %s210, %s211
          %s213 = smul.addr %s212, 4
          %s214 = scalar_lea.vmem %s0, %s213
          %s215 = smul.u32 2, %s22
        $region28: #{tpu_custom_call.1} parent=23 // pred_fallthru
          _
        // Predicated region
        $region29: #{tpu_custom_call.1} parent=23 // pred_check
          %p216 = pneg %p76
        $region30: #{tpu_custom_call.1} parent=23 // pred_check_branch
          %218 = sbr.rel (%p216) target = $region32
        $region31: #{tpu_custom_call.1} parent=23 // pred_region
          %s219 = smul.u32 2, %s22
          %p220 = scmp.lt.s32.totalorder %s21, 1
          %s221 = scalar_select %p220, %s21, 1
          %p222 = scmp.lt.s32.totalorder %s219, 1
          %s223 = scalar_select %p222, %s219, 1
          %s224 = smul.addr %s221, 2
          %s225 = sadd.s32 %s223, %s224
          %s226 = smul.addr %s225, 4
          %s227 = scalar_lea.vmem %s1, %s226
          %s228 = smul.u32 2, %s22
        $region32: #{tpu_custom_call.1} parent=23 // pred_fallthru
          _
        // Predicated region
        $region33: #{tpu_custom_call.1} parent=23 // pred_check
          %p229 = pneg %p144
        $region34: #{tpu_custom_call.1} parent=23 // pred_check_branch
          %231 = sbr.rel (%p229) target = $region36
        $region35: #{tpu_custom_call.1} parent=23 // pred_region
          %p232 = scmp.lt.s32.totalorder %s21, 1
          %s233 = scalar_select %p232, %s21, 1
          %s234 = smul.addr %s233, 2
          %s235 = smul.addr %s234, 8
          %s236 = scalar_lea.vmem %s4, %s235
        $region36: #{tpu_custom_call.1} parent=23 // pred_fallthru
          _
      $region24: #{tpu_custom_call.1} parent=5 // pred_fallthru
        _
      %p237 = scmp.le.s32.totalorder 1, %s14
      %p238 = scmp.lt.s32.totalorder %s14, 3
      %p239 = pnand %p237, %p238
      %p240 = pneg %p239
      // Predicated region
      $region37: #{tpu_custom_call.1} parent=5 // pred_check
        _
      $region38: #{tpu_custom_call.1} parent=5 // pred_check_branch
        %242 = sbr.rel (%p239) target = $region40
      $region39: #{tpu_custom_call.1} parent=5 // pred_region
        %s243 = ssub.s32 %s14, 1
        %s244 = smul.u32 2, %s24
        %p245 = scmp.lt.s32.totalorder %s23, 1
        %s246 = scalar_select %p245, %s23, 1
        %p247 = scmp.lt.s32.totalorder %s244, 1
        %s248 = scalar_select %p247, %s244, 1
        %s249 = smul.addr %s246, 2
        %s250 = sadd.s32 %s248, %s249
        %s251 = smul.addr %s250, 4
        %s252 = scalar_lea.vmem %s0, %s251
        %p253 = pneg %p54
        %p254 = pneg %p51
        %s255 = smul.u32 2, %s24
        %p256 = scmp.lt.s32.totalorder %s23, 1
        %s257 = scalar_select %p256, %s23, 1
        %p258 = scmp.lt.s32.totalorder %s255, 1
        %s259 = scalar_select %p258, %s255, 1
        %s260 = smul.addr %s257, 2
        %s261 = sadd.s32 %s259, %s260
        %s262 = smul.addr %s261, 4
        %s263 = scalar_lea.vmem %s1, %s262
        %p264 = pneg %p82
        %p265 = pneg %p79
        %p266 = pneg %p103
        %p267 = pneg %p100
        %p268 = pneg %p124
        %p269 = pneg %p121
        %p270 = scmp.lt.s32.totalorder %s23, 1
        %s271 = scalar_select %p270, %s23, 1
        %s272 = smul.addr %s271, 2
        %s273 = smul.addr %s272, 8
        %s274 = scalar_lea.vmem %s4, %s273
        %p275 = pneg %p150
        %p276 = pneg %p147
        %p277 = pneg %p178
        %p278 = pneg %p175
        %s279 = sand.u32 %s165, 1
        %s280 = scalar_lea.sflag [#allocation3], %s279
        %s281 = sand.u32 %s165, 1
        %s282 = smul.addr %s281, 32
        %s283 = scalar_lea.vmem [#allocation2], %s282
        %s284 = smul.u32 2, %s24
        %p285 = scmp.lt.s32.totalorder %s23, 1
        %s286 = scalar_select %p285, %s23, 1
        %p287 = scmp.lt.s32.totalorder %s284, 1
        %s288 = scalar_select %p287, %s284, 1
        %s289 = smul.addr %s286, 2
        %s290 = sadd.s32 %s288, %s289
        %s291 = smul.addr %s290, 4
        %s292 = scalar_lea.vmem %s0, %s291
        %s293 = smul.u32 2, %s24
        %s294 = smul.u32 2, %s24
        %p295 = scmp.lt.s32.totalorder %s23, 1
        %s296 = scalar_select %p295, %s23, 1
        %p297 = scmp.lt.s32.totalorder %s294, 1
        %s298 = scalar_select %p297, %s294, 1
        %s299 = smul.addr %s296, 2
        %s300 = sadd.s32 %s298, %s299
        %s301 = smul.addr %s300, 4
        %s302 = scalar_lea.vmem %s1, %s301
        %s303 = smul.u32 2, %s24
        %p304 = scmp.lt.s32.totalorder %s23, 1
        %s305 = scalar_select %p304, %s23, 1
        %s306 = smul.addr %s305, 2
        %s307 = smul.addr %s306, 8
        %s308 = scalar_lea.vmem %s4, %s307
        %s309 = smul.u32 2, %s24
        %v310 = vld [vmem:[%s2] sm:$0xff]
        %v311 = vld [vmem:[%s2 + $0x8] sm:$0xff]
        %v312 = vld [vmem:[%s292] sm:$0xff]
        %v313 = vld [vmem:[%s3] sm:$0xff]
        %v314 = vld [vmem:[%s3 + $0x8] sm:$0xff]
        %v315 = vld [vmem:[%s302] sm:$0xff]
        %v317 = vcombine.high %v315, %v315
        %vm318 = vcmask 31744
        %v320 = vsel %vm318, %v313, 0
        %v323 = vsel %vm318, %v314, 0
        %vm325 = vcmask 1043456
        %v326 = vsel %vm325, %v315, 0
        %v328 = vsel %vm325, %v317, 0
        %330 = vmatprep.subr.mxu0 %v328
        %331 = vmatpush1.msra.mxu0 %v326
        %332 = vmatprep.subr.mxu0 0.0
        %333 = vmatpush1.msra.mxu0 0.0
        %334 = vmatprep.subr.mxu0 0.0
        %335 = vmatpush1.msra.mxu0 0.0
        %336 = vmatprep.subr.mxu0 0.0
        %337 = vmatpush1.msra.mxu0 0.0
        %338 = vmatprep.subr.mxu0 0.0
        %339 = vmatpush1.msra.mxu0 0.0
        %340 = vmatprep.subr.mxu0 0.0
        %341 = vmatpush1.msra.mxu0 0.0
        %342 = vmatprep.subr.mxu0 0.0
        %343 = vmatpush1.msra.mxu0 0.0
        %344 = vmatprep.subr.mxu0 0.0
        %345 = vmatpush1.msra.mxu0 0.0
        %346 = vmatprep.subr.mxu0 0.0
        %347 = vmatpush1.msra.mxu0 0.0
        %348 = vmatprep.subr.mxu0 0.0
        %349 = vmatpush1.msra.mxu0 0.0
        %350 = vmatprep.subr.mxu0 0.0
        %351 = vmatpush1.msra.mxu0 0.0
        %352 = vmatprep.subr.mxu0 0.0
        %353 = vmatpush1.msra.mxu0 0.0
        %354 = vmatprep.subr.mxu0 0.0
        %355 = vmatpush1.msra.mxu0 0.0
        %356 = vmatprep.subr.mxu0 0.0
        %357 = vmatpush1.msra.mxu0 0.0
        %358 = vmatprep.subr.mxu0 0.0
        %359 = vmatpush1.msra.mxu0 0.0
        %360 = vmatprep.subr.mxu0 0.0
        %361 = vmatpush1.msra.mxu0 0.0
        %362 = vmatprep.subr.mxu0 0.0
        %363 = vmatpush1.msra.mxu0 0.0
        %364 = vmatprep.subr.mxu0 0.0
        %365 = vmatpush1.msra.mxu0 0.0
        %366 = vmatprep.subr.mxu0 0.0
        %367 = vmatpush1.msra.mxu0 0.0
        %368 = vmatprep.subr.mxu0 0.0
        %369 = vmatpush1.msra.mxu0 0.0
        %370 = vmatprep.subr.mxu0 0.0
        %371 = vmatpush1.msra.mxu0 0.0
        %372 = vmatprep.subr.mxu0 0.0
        %373 = vmatpush1.msra.mxu0 0.0
        %374 = vmatprep.subr.mxu0 0.0
        %375 = vmatpush1.msra.mxu0 0.0
        %376 = vmatprep.subr.mxu0 0.0
        %377 = vmatpush1.msra.mxu0 0.0
        %378 = vmatprep.subr.mxu0 0.0
        %379 = vmatpush1.msra.mxu0 0.0
        %380 = vmatprep.subr.mxu0 0.0
        %381 = vmatpush1.msra.mxu0 0.0
        %382 = vmatprep.subr.mxu0 0.0
        %383 = vmatpush1.msra.mxu0 0.0
        %384 = vmatprep.subr.mxu0 0.0
        %385 = vmatpush1.msra.mxu0 0.0
        %386 = vmatprep.subr.mxu0 0.0
        %387 = vmatpush1.msra.mxu0 0.0
        %388 = vmatprep.subr.mxu0 0.0
        %389 = vmatpush1.msra.mxu0 0.0
        %390 = vmatprep.subr.mxu0 0.0
        %391 = vmatpush1.msra.mxu0 0.0
        %392 = vmatprep.subr.mxu0 0.0
        %393 = vmatpush1.msra.mxu0 0.0
        %394 = vmatprep.mubr.f32.mxu0 0.0
        %395 = vmatmul.mubr.f32.gmra.mrb[0].mxu0 %v320
        %v396 = vpop.f32.mrb[0].mxu0
        %v397 = vadd.f32 0.0, %v396
        %v398 = vpop.f32.mrb[0].mxu0
        %v399 = vadd.f32 0.0, %v398
        %400 = vmatprep.mubr.f32.mxu0 0.0
        %401 = vmatmul.mubr.f32.gmra.mrb[0].mxu0 %v323
        %v402 = vpop.f32.mrb[0].mxu0
        %v403 = vadd.f32 0.0, %v402
        %v404 = vpop.f32.mrb[0].mxu0
        %v405 = vadd.f32 0.0, %v404
        %406 = vdwg.mxu0
        %v408 = vcombine.high %v312, %v312
        %v410 = vsel %vm318, %v310, 0
        %v413 = vsel %vm318, %v311, 0
        %v415 = vsel %vm325, %v312, 0
        %v417 = vsel %vm325, %v408, 0
        %419 = vmatprep.subr.mxu0 %v417
        %420 = vmatpush1.msra.mxu0 %v415
        %421 = vmatprep.subr.mxu0 0.0
        %422 = vmatpush1.msra.mxu0 0.0
        %423 = vmatprep.subr.mxu0 0.0
        %424 = vmatpush1.msra.mxu0 0.0
        %425 = vmatprep.subr.mxu0 0.0
        %426 = vmatpush1.msra.mxu0 0.0
        %427 = vmatprep.subr.mxu0 0.0
        %428 = vmatpush1.msra.mxu0 0.0
        %429 = vmatprep.subr.mxu0 0.0
        %430 = vmatpush1.msra.mxu0 0.0
        %431 = vmatprep.subr.mxu0 0.0
        %432 = vmatpush1.msra.mxu0 0.0
        %433 = vmatprep.subr.mxu0 0.0
        %434 = vmatpush1.msra.mxu0 0.0
        %435 = vmatprep.subr.mxu0 0.0
        %436 = vmatpush1.msra.mxu0 0.0
        %437 = vmatprep.subr.mxu0 0.0
        %438 = vmatpush1.msra.mxu0 0.0
        %439 = vmatprep.subr.mxu0 0.0
        %440 = vmatpush1.msra.mxu0 0.0
        %441 = vmatprep.subr.mxu0 0.0
        %442 = vmatpush1.msra.mxu0 0.0
        %443 = vmatprep.subr.mxu0 0.0
        %444 = vmatpush1.msra.mxu0 0.0
        %445 = vmatprep.subr.mxu0 0.0
        %446 = vmatpush1.msra.mxu0 0.0
        %447 = vmatprep.subr.mxu0 0.0
        %448 = vmatpush1.msra.mxu0 0.0
        %449 = vmatprep.subr.mxu0 0.0
        %450 = vmatpush1.msra.mxu0 0.0
        %451 = vmatprep.subr.mxu0 0.0
        %452 = vmatpush1.msra.mxu0 0.0
        %453 = vmatprep.subr.mxu0 0.0
        %454 = vmatpush1.msra.mxu0 0.0
        %455 = vmatprep.subr.mxu0 0.0
        %456 = vmatpush1.msra.mxu0 0.0
        %457 = vmatprep.subr.mxu0 0.0
        %458 = vmatpush1.msra.mxu0 0.0
        %459 = vmatprep.subr.mxu0 0.0
        %460 = vmatpush1.msra.mxu0 0.0
        %461 = vmatprep.subr.mxu0 0.0
        %462 = vmatpush1.msra.mxu0 0.0
        %463 = vmatprep.subr.mxu0 0.0
        %464 = vmatpush1.msra.mxu0 0.0
        %465 = vmatprep.subr.mxu0 0.0
        %466 = vmatpush1.msra.mxu0 0.0
        %467 = vmatprep.subr.mxu0 0.0
        %468 = vmatpush1.msra.mxu0 0.0
        %469 = vmatprep.subr.mxu0 0.0
        %470 = vmatpush1.msra.mxu0 0.0
        %471 = vmatprep.subr.mxu0 0.0
        %472 = vmatpush1.msra.mxu0 0.0
        %473 = vmatprep.subr.mxu0 0.0
        %474 = vmatpush1.msra.mxu0 0.0
        %475 = vmatprep.subr.mxu0 0.0
        %476 = vmatpush1.msra.mxu0 0.0
        %477 = vmatprep.subr.mxu0 0.0
        %478 = vmatpush1.msra.mxu0 0.0
        %479 = vmatprep.subr.mxu0 0.0
        %480 = vmatpush1.msra.mxu0 0.0
        %481 = vmatprep.subr.mxu0 0.0
        %482 = vmatpush1.msra.mxu0 0.0
        %483 = vmatprep.mubr.f32.mxu0 0.0
        %484 = vmatmul.mubr.f32.gmra.mrb[0].mxu0 %v410
        %v485 = vpop.f32.mrb[0].mxu0
        %v486 = vadd.f32 %v397, %v485
        %v487 = vpop.f32.mrb[0].mxu0
        %v488 = vadd.f32 %v399, %v487
        %489 = vmatprep.mubr.f32.mxu0 0.0
        %490 = vmatmul.mubr.f32.gmra.mrb[0].mxu0 %v413
        %v491 = vpop.f32.mrb[0].mxu0
        %v492 = vadd.f32 %v403, %v491
        %v493 = vpop.f32.mrb[0].mxu0
        %v494 = vadd.f32 %v405, %v493
        %495 = vdwg.mxu0
        %v496 = vld [vmem:[%s308] sm:$0xff]
        %v497 = vld [vmem:[%s308 + $0x8] sm:$0xff]
        %499 = vset.pattern.permute.xlu0 0
        %500 = vperm.xlu0 %499, %v496
        %v501 = vpop.permute.xlu0 %500
        %504 = vset.pattern.permute.xlu0 0
        %505 = vperm.xlu0 %504, %v497
        %v506 = vpop.permute.xlu0 %505
        %v508 = vmul.f32 %v486, %v501
        %v509 = vmul.f32 %v488, %v501
        %v510 = vmul.f32 %v492, %v506
        %v511 = vmul.f32 %v494, %v506
        %512 = vst [vmem:[%s283] sm:$0xff] %v508
        %513 = vst [vmem:[%s283 + $0x8] sm:$0xff] %v509
        %514 = vst [vmem:[%s283 + $0x10] sm:$0xff] %v510
        %515 = vst [vmem:[%s283 + $0x18] sm:$0xff] %v511
        %s516 = sand.u32 %s165, 1
        %s517 = scalar_lea.sflag [#allocation3], %s516
        %s518 = sand.u32 %s165, 1
        %s519 = smul.addr %s518, 32
        %s520 = scalar_lea.vmem [#allocation2], %s519
        // Predicated region
        $region41: #{tpu_custom_call.1} parent=39 // pred_check
          %p521 = pneg %p175
        $region42: #{tpu_custom_call.1} parent=39 // pred_check_branch
          %523 = sbr.rel (%p521) target = $region44
        $region43: #{tpu_custom_call.1} parent=39 // pred_region
          %s524 = smul.u32 2, %s24
          %s526 = ssub.s32 512, 512
          %527 = vsyncadd %s517, %s526
          %s528 = smul.addr %s23, 4
          %s529 = sadd.s32 %s524, %s528
          %s530 = smul.addr %s529, 128
          %s531 = scalar_lea.hbm %s5, %s530
          %s532 = sshll.u32 %s520, 4
          %s533 = int_to_ptr.vmem [resolvable:$true] %s532
          %538 = dma.vmem_to_hbm [thread:$0]  %s533, 512, %s531, %s517, 256, 256, 16
        $region44: #{tpu_custom_call.1} parent=39 // pred_fallthru
          _
      $region40: #{tpu_custom_call.1} parent=5 // pred_fallthru
        _
      %p539 = scmp.le.s32.totalorder 2, %s14
      // Predicated region
      $region45: #{tpu_custom_call.1} parent=5 // pred_check
        %p540 = pneg %p539
      $region46: #{tpu_custom_call.1} parent=5 // pred_check_branch
        %542 = sbr.rel (%p540) target = $region48
      $region47: #{tpu_custom_call.1} parent=5 // pred_region
        %s543 = ssub.s32 %s14, 2
        // Predicated region
        $region49: #{tpu_custom_call.1} parent=47 // pred_check
          %p544 = pneg %p181
        $region50: #{tpu_custom_call.1} parent=47 // pred_check_branch
          %546 = sbr.rel (%p544) target = $region52
        $region51: #{tpu_custom_call.1} parent=47 // pred_region
          %s547 = sand.u32 %s166, 1
          %s548 = scalar_lea.sflag [#allocation3], %s547
          %s549 = sand.u32 %s166, 1
          %s550 = smul.addr %s549, 32
          %s551 = scalar_lea.vmem [#allocation2], %s550
          %552 = dma.done %s548, 512
        $region52: #{tpu_custom_call.1} parent=47 // pred_fallthru
          _
      $region48: #{tpu_custom_call.1} parent=5 // pred_fallthru
        _
    $region6: #{tpu_custom_call.1} parent=1 // loop_footer
      %s18 = sadd.s32 1, %s14
    $region7: #{tpu_custom_call.1} parent=1 // loop_footer_branch
      %13 = sbr.rel target = $region3
    $region8: #{tpu_custom_call.1} parent=1 // loop_exit
      _
    %553 = vsyncpa [#allocation3], 1
    %s554 = scalar_lea.sflag [#allocation3], 1
    %555 = vsyncpa %s554, 1

</llo_original>
